<compile_context>
chip_gen: v7x
topology: tpu7x:2x2x1
jax: 0.10.0
libtpu: 0.0.40
codegen_flags: <defaults>
</compile_context>

<pallas_src>
import functools

import jax
import jax.numpy as jnp
from jax import lax
from jax.experimental import pallas as pl
from jax.experimental.pallas import tpu as pltpu

NUM_JOINTS = 24
FOOT_IDX = (1, 4, 7, 10, 2, 5, 8, 11)  # l/r hip, knee, ankle, toe
LANES = 128
N_CORES = 2  # parallel grid axis (v7x has 2 TCs; extra axis is harmless elsewhere)


def _round_up(x, m):
    return ((x + m - 1) // m) * m


def _zmp_loss_kernel(j_ref, p_ref, out_ref, *, tile_m, tiles_per_core,
                     n_valid, n_padded):
    # j_ref: (48, tile_m, 128)   p_ref: (4, tile_m, 128)   out_ref: (8, 128)
    c = pl.program_id(0)
    i = pl.program_id(1)

    @pl.when(i == 0)
    def _():
        out_ref[...] = jnp.zeros_like(out_ref)

    def coord(joint, axis):
        # Dense (tile_m, 128) tile; widen to f32 for the arithmetic.
        return j_ref[joint * 2 + axis].astype(jnp.float32)

    # Center of mass (only x / y are needed downstream; zmp_z == 0).
    com_x = coord(0, 0)
    com_y = coord(0, 1)
    for jt in range(1, NUM_JOINTS):
        com_x = com_x + coord(jt, 0)
        com_y = com_y + coord(jt, 1)
    com_x = com_x * (1.0 / NUM_JOINTS)
    com_y = com_y * (1.0 / NUM_JOINTS)

    # Foot joints: incremental min/max/sum (keeps live vreg count small).
    fx = coord(FOOT_IDX[0], 0)
    fy = coord(FOOT_IDX[0], 1)
    x_min, x_max, sum_x = fx, fx, fx
    y_min, y_max, sum_y = fy, fy, fy
    for jt in FOOT_IDX[1:]:
        vx = coord(jt, 0)
        vy = coord(jt, 1)
        x_min = jnp.minimum(x_min, vx)
        x_max = jnp.maximum(x_max, vx)
        sum_x = sum_x + vx
        y_min = jnp.minimum(y_min, vy)
        y_max = jnp.maximum(y_max, vy)
        sum_y = sum_y + vy

    support_area = (x_max - x_min) * (y_max - y_min)          # (tile_m, 128)
    foot_mean_x = sum_x * (1.0 / len(FOOT_IDX))
    foot_mean_y = sum_y * (1.0 / len(FOOT_IDX))

    # exp goes to the EUP; exact reciprocal keeps numerics tight vs. reference.
    inv_area = pl.reciprocal(support_area, approx=False)
    factor = (1.0 - jnp.exp(support_area * (-1.0 / 10000.0))) * inv_area
    zmp_x = com_x - (foot_mean_x - com_x) * factor
    zmp_y = com_y - (foot_mean_y - com_y) * factor

    n0 = p_ref[0].astype(jnp.float32)
    n1 = p_ref[1].astype(jnp.float32)
    n2 = p_ref[2].astype(jnp.float32)
    d = p_ref[3].astype(jnp.float32)

    dot = n0 * zmp_x + n1 * zmp_y                   # zmp_z == 0 drops out
    inv_norm = lax.rsqrt(n0 * n0 + n1 * n1 + n2 * n2)
    dist = jnp.abs(dot + d) * inv_norm              # (tile_m, 128)

    if n_padded != n_valid:
        # Mask out padded frames (their support_area == 0 would produce NaN).
        block_m = c * tiles_per_core + i
        mm = lax.broadcasted_iota(jnp.int32, (tile_m, LANES), 0)
        ll = lax.broadcasted_iota(jnp.int32, (tile_m, LANES), 1)
        flat = (block_m * tile_m + mm) * LANES + ll
        dist = jnp.where(flat < n_valid, dist, 0.0)

    # vreg-shaped partial sum; final cross-lane reduce + /N happens outside.
    out_ref[...] += dist.reshape(tile_m // 8, 8, LANES).sum(axis=0)


def zmp_loss(pred_joints, plane_model, *, tile_m=128):
    """pred_joints: (B, T, 24, 3), plane_model: (B, T, 4) -> scalar f32."""
    B, T, J, C = pred_joints.shape
    assert J == NUM_JOINTS and C == 3
    N = B * T

    m_needed = pl.cdiv(N, LANES)                 # number of 128-wide frame rows
    tile_m = max(8, min(tile_m, _round_up(m_needed, 8)))
    # Only split across cores when there is at least one tile per core.
    n_cores = N_CORES if pl.cdiv(m_needed, tile_m) >= N_CORES else 1
    tiles_total = _round_up(pl.cdiv(m_needed, tile_m), n_cores)
    tiles_per_core = tiles_total // n_cores
    m_pad = tiles_total * tile_m
    n_pad = m_pad * LANES

    # Keep the input dtype (bf16 stays bf16 in HBM); widen to f32 in-kernel.
    # Drop the z coordinate: it never contributes to the loss.
    joints = pred_joints[..., :2].reshape(N, J * 2)        # (N, 48)
    plane = plane_model.reshape(N, 4)
    if n_pad != N:
        joints = jnp.pad(joints, ((0, n_pad - N), (0, 0)))
        plane = jnp.pad(plane, ((0, n_pad - N), (0, 0)))
    # (48, m_pad, 128) / (4, m_pad, 128): coord-major, frames dense in (sub)lanes.
    joints = joints.reshape(m_pad, LANES, J * 2).transpose(2, 0, 1)
    plane = plane.reshape(m_pad, LANES, 4).transpose(2, 0, 1)

    kernel = functools.partial(
        _zmp_loss_kernel, tile_m=tile_m, tiles_per_core=tiles_per_core,
        n_valid=N, n_padded=n_pad)

    j_item = jnp.dtype(pred_joints.dtype).itemsize
    p_item = jnp.dtype(plane_model.dtype).itemsize
    cost = pl.CostEstimate(
        flops=120 * n_pad,
        transcendentals=3 * n_pad,
        bytes_accessed=(J * 2 * j_item + 4 * p_item) * n_pad
        + n_cores * 8 * LANES * 4)

    partial_sums = pl.pallas_call(
        kernel,
        out_shape=jax.ShapeDtypeStruct((n_cores * 8, LANES), jnp.float32),
        grid=(n_cores, tiles_per_core),
        in_specs=[
            pl.BlockSpec((J * 2, tile_m, LANES),
                         lambda c, i: (0, c * tiles_per_core + i, 0)),
            pl.BlockSpec((4, tile_m, LANES),
                         lambda c, i: (0, c * tiles_per_core + i, 0)),
        ],
        out_specs=pl.BlockSpec((8, LANES), lambda c, i: (c, 0)),
        compiler_params=pltpu.CompilerParams(
            dimension_semantics=("parallel", "arbitrary"),
            vmem_limit_bytes=64 * 1024 * 1024,
            allow_input_fusion=[True, True]),
        cost_estimate=cost,
    )(joints, plane)

    return jnp.sum(partial_sums) / jnp.float32(N)


def zmp_loss_ref(pred_joints, plane_model):
    """Pure-JAX reference mirroring the PyTorch module."""
    j = pred_joints.astype(jnp.float32)
    com = j.mean(axis=2)                                       # (B, T, 3)
    foot = jnp.concatenate([j[:, :, i:i + 1, :] for i in FOOT_IDX], axis=2)
    x_min = foot[..., 0].min(axis=2)
    x_max = foot[..., 0].max(axis=2)
    y_min = foot[..., 1].min(axis=2)
    y_max = foot[..., 1].max(axis=2)
    support_area = (x_max - x_min) * (y_max - y_min)
    fm = foot.mean(axis=2)
    factor = (1.0 - jnp.exp(-support_area / 10000.0)) / support_area
    zmp_x = com[..., 0] - (fm[..., 0] - com[..., 0]) * factor
    zmp_y = com[..., 1] - (fm[..., 1] - com[..., 1]) * factor
    zmp = jnp.stack([zmp_x, zmp_y, jnp.zeros_like(zmp_x)], axis=-1)
    normal = plane_model[..., :3].astype(jnp.float32)
    dist = jnp.abs(jnp.sum(normal * zmp, axis=-1) + plane_model[..., 3]) / \
        jnp.linalg.norm(normal, axis=-1)
    return dist.mean()


if __name__ == "__main__":
    key = jax.random.PRNGKey(0)
    k1, k2 = jax.random.split(key)

    B, T = 2, 8
    pred_joints = jax.random.normal(k1, (B, T, NUM_JOINTS, 3), jnp.float32)
    plane_model = jax.random.normal(k2, (B, T, 4), jnp.float32)

    loss = jax.jit(zmp_loss)(pred_joints, plane_model)
    loss = jax.block_until_ready(loss)

    ref = zmp_loss_ref(pred_joints, plane_model)
    assert jnp.allclose(loss, ref, rtol=5e-4, atol=1e-5), (loss, ref)

    print("KERNEL_OK")
</pallas_src>

<mosaic_0001>
module attributes {stable_mosaic.version = 11 : i64} {
  func.func @_zmp_loss_kernel(%arg0: i32, %arg1: i32, %arg2: memref<48x8x128xf32, #tpu.memory_space<vmem>>, %arg3: memref<4x8x128xf32, #tpu.memory_space<vmem>>, %arg4: memref<8x128xf32, #tpu.memory_space<vmem>>) attributes {dimension_semantics = [#tpu.dimension_semantics<parallel>, #tpu.dimension_semantics<arbitrary>], iteration_bounds = array<i64: 1, 1>, scalar_prefetch = 0 : i64, scratch_operands = 0 : i64, tpu.core_type = #tpu.core_type<tc>, window_params = [{transform_indices = @transform_0, window_bounds = array<i64: 48, 8, 128>}, {transform_indices = @transform_1, window_bounds = array<i64: 4, 8, 128>}, {transform_indices = @transform_2, window_bounds = array<i64: 8, 128>}]} {
    %c0_i32 = arith.constant 0 : i32
    %0 = arith.cmpi eq, %arg1, %c0_i32 : i32
    %1 = arith.extui %0 : i1 to i32
    %c0_i32_0 = arith.constant 0 : i32
    %2 = arith.cmpi ne, %1, %c0_i32_0 : i32
    scf.if %2 {
      %cst_168 = arith.constant 0.000000e+00 : f32
      %282 = vector.broadcast %cst_168 : f32 to vector<8x128xf32>
      %c0_169 = arith.constant 0 : index
      %c0_170 = arith.constant 0 : index
      %283 = vector.load %arg4[%c0_169, %c0_170] : memref<8x128xf32, #tpu.memory_space<vmem>>, vector<8x128xf32>
      tpu.vector_store %arg4[%c0_169, %c0_170], %282 {strides = array<i32>} : memref<8x128xf32, #tpu.memory_space<vmem>>, vector<8x128xf32>,
    } else {
    }
    %c0 = arith.constant 0 : index
    %c0_1 = arith.constant 0 : index
    %c0_2 = arith.constant 0 : index
    %3 = vector.load %arg2[%c0, %c0_1, %c0_2] : memref<48x8x128xf32, #tpu.memory_space<vmem>>, vector<1x8x128xf32>
    %4 = vector.shape_cast %3 : vector<1x8x128xf32> to vector<8x128xf32>
    %c1 = arith.constant 1 : index
    %c0_3 = arith.constant 0 : index
    %c0_4 = arith.constant 0 : index
    %5 = vector.load %arg2[%c1, %c0_3, %c0_4] : memref<48x8x128xf32, #tpu.memory_space<vmem>>, vector<1x8x128xf32>
    %6 = vector.shape_cast %5 : vector<1x8x128xf32> to vector<8x128xf32>
    %c2 = arith.constant 2 : index
    %c0_5 = arith.constant 0 : index
    %c0_6 = arith.constant 0 : index
    %7 = vector.load %arg2[%c2, %c0_5, %c0_6] : memref<48x8x128xf32, #tpu.memory_space<vmem>>, vector<1x8x128xf32>
    %8 = vector.shape_cast %7 : vector<1x8x128xf32> to vector<8x128xf32>
    %9 = arith.addf %4, %8 : vector<8x128xf32>
    %c3 = arith.constant 3 : index
    %c0_7 = arith.constant 0 : index
    %c0_8 = arith.constant 0 : index
    %10 = vector.load %arg2[%c3, %c0_7, %c0_8] : memref<48x8x128xf32, #tpu.memory_space<vmem>>, vector<1x8x128xf32>
    %11 = vector.shape_cast %10 : vector<1x8x128xf32> to vector<8x128xf32>
    %12 = arith.addf %6, %11 : vector<8x128xf32>
    %c4 = arith.constant 4 : index
    %c0_9 = arith.constant 0 : index
    %c0_10 = arith.constant 0 : index
    %13 = vector.load %arg2[%c4, %c0_9, %c0_10] : memref<48x8x128xf32, #tpu.memory_space<vmem>>, vector<1x8x128xf32>
    %14 = vector.shape_cast %13 : vector<1x8x128xf32> to vector<8x128xf32>
    %15 = arith.addf %9, %14 : vector<8x128xf32>
    %c5 = arith.constant 5 : index
    %c0_11 = arith.constant 0 : index
    %c0_12 = arith.constant 0 : index
    %16 = vector.load %arg2[%c5, %c0_11, %c0_12] : memref<48x8x128xf32, #tpu.memory_space<vmem>>, vector<1x8x128xf32>
    %17 = vector.shape_cast %16 : vector<1x8x128xf32> to vector<8x128xf32>
    %18 = arith.addf %12, %17 : vector<8x128xf32>
    %c6 = arith.constant 6 : index
    %c0_13 = arith.constant 0 : index
    %c0_14 = arith.constant 0 : index
    %19 = vector.load %arg2[%c6, %c0_13, %c0_14] : memref<48x8x128xf32, #tpu.memory_space<vmem>>, vector<1x8x128xf32>
    %20 = vector.shape_cast %19 : vector<1x8x128xf32> to vector<8x128xf32>
    %21 = arith.addf %15, %20 : vector<8x128xf32>
    %c7 = arith.constant 7 : index
    %c0_15 = arith.constant 0 : index
    %c0_16 = arith.constant 0 : index
    %22 = vector.load %arg2[%c7, %c0_15, %c0_16] : memref<48x8x128xf32, #tpu.memory_space<vmem>>, vector<1x8x128xf32>
    %23 = vector.shape_cast %22 : vector<1x8x128xf32> to vector<8x128xf32>
    %24 = arith.addf %18, %23 : vector<8x128xf32>
    %c8 = arith.constant 8 : index
    %c0_17 = arith.constant 0 : index
    %c0_18 = arith.constant 0 : index
    %25 = vector.load %arg2[%c8, %c0_17, %c0_18] : memref<48x8x128xf32, #tpu.memory_space<vmem>>, vector<1x8x128xf32>
    %26 = vector.shape_cast %25 : vector<1x8x128xf32> to vector<8x128xf32>
    %27 = arith.addf %21, %26 : vector<8x128xf32>
    %c9 = arith.constant 9 : index
    %c0_19 = arith.constant 0 : index
    %c0_20 = arith.constant 0 : index
    %28 = vector.load %arg2[%c9, %c0_19, %c0_20] : memref<48x8x128xf32, #tpu.memory_space<vmem>>, vector<1x8x128xf32>
    %29 = vector.shape_cast %28 : vector<1x8x128xf32> to vector<8x128xf32>
    %30 = arith.addf %24, %29 : vector<8x128xf32>
    %c10 = arith.constant 10 : index
    %c0_21 = arith.constant 0 : index
    %c0_22 = arith.constant 0 : index
    %31 = vector.load %arg2[%c10, %c0_21, %c0_22] : memref<48x8x128xf32, #tpu.memory_space<vmem>>, vector<1x8x128xf32>
    %32 = vector.shape_cast %31 : vector<1x8x128xf32> to vector<8x128xf32>
    %33 = arith.addf %27, %32 : vector<8x128xf32>
    %c11 = arith.constant 11 : index
    %c0_23 = arith.constant 0 : index
    %c0_24 = arith.constant 0 : index
    %34 = vector.load %arg2[%c11, %c0_23, %c0_24] : memref<48x8x128xf32, #tpu.memory_space<vmem>>, vector<1x8x128xf32>
    %35 = vector.shape_cast %34 : vector<1x8x128xf32> to vector<8x128xf32>
    %36 = arith.addf %30, %35 : vector<8x128xf32>
    %c12 = arith.constant 12 : index
    %c0_25 = arith.constant 0 : index
    %c0_26 = arith.constant 0 : index
    %37 = vector.load %arg2[%c12, %c0_25, %c0_26] : memref<48x8x128xf32, #tpu.memory_space<vmem>>, vector<1x8x128xf32>
    %38 = vector.shape_cast %37 : vector<1x8x128xf32> to vector<8x128xf32>
    %39 = arith.addf %33, %38 : vector<8x128xf32>
    %c13 = arith.constant 13 : index
    %c0_27 = arith.constant 0 : index
    %c0_28 = arith.constant 0 : index
    %40 = vector.load %arg2[%c13, %c0_27, %c0_28] : memref<48x8x128xf32, #tpu.memory_space<vmem>>, vector<1x8x128xf32>
    %41 = vector.shape_cast %40 : vector<1x8x128xf32> to vector<8x128xf32>
    %42 = arith.addf %36, %41 : vector<8x128xf32>
    %c14 = arith.constant 14 : index
    %c0_29 = arith.constant 0 : index
    %c0_30 = arith.constant 0 : index
    %43 = vector.load %arg2[%c14, %c0_29, %c0_30] : memref<48x8x128xf32, #tpu.memory_space<vmem>>, vector<1x8x128xf32>
    %44 = vector.shape_cast %43 : vector<1x8x128xf32> to vector<8x128xf32>
    %45 = arith.addf %39, %44 : vector<8x128xf32>
    %c15 = arith.constant 15 : index
    %c0_31 = arith.constant 0 : index
    %c0_32 = arith.constant 0 : index
    %46 = vector.load %arg2[%c15, %c0_31, %c0_32] : memref<48x8x128xf32, #tpu.memory_space<vmem>>, vector<1x8x128xf32>
    %47 = vector.shape_cast %46 : vector<1x8x128xf32> to vector<8x128xf32>
    %48 = arith.addf %42, %47 : vector<8x128xf32>
    %c16 = arith.constant 16 : index
    %c0_33 = arith.constant 0 : index
    %c0_34 = arith.constant 0 : index
    %49 = vector.load %arg2[%c16, %c0_33, %c0_34] : memref<48x8x128xf32, #tpu.memory_space<vmem>>, vector<1x8x128xf32>
    %50 = vector.shape_cast %49 : vector<1x8x128xf32> to vector<8x128xf32>
    %51 = arith.addf %45, %50 : vector<8x128xf32>
    %c17 = arith.constant 17 : index
    %c0_35 = arith.constant 0 : index
    %c0_36 = arith.constant 0 : index
    %52 = vector.load %arg2[%c17, %c0_35, %c0_36] : memref<48x8x128xf32, #tpu.memory_space<vmem>>, vector<1x8x128xf32>
    %53 = vector.shape_cast %52 : vector<1x8x128xf32> to vector<8x128xf32>
    %54 = arith.addf %48, %53 : vector<8x128xf32>
    %c18 = arith.constant 18 : index
    %c0_37 = arith.constant 0 : index
    %c0_38 = arith.constant 0 : index
    %55 = vector.load %arg2[%c18, %c0_37, %c0_38] : memref<48x8x128xf32, #tpu.memory_space<vmem>>, vector<1x8x128xf32>
    %56 = vector.shape_cast %55 : vector<1x8x128xf32> to vector<8x128xf32>
    %57 = arith.addf %51, %56 : vector<8x128xf32>
    %c19 = arith.constant 19 : index
    %c0_39 = arith.constant 0 : index
    %c0_40 = arith.constant 0 : index
    %58 = vector.load %arg2[%c19, %c0_39, %c0_40] : memref<48x8x128xf32, #tpu.memory_space<vmem>>, vector<1x8x128xf32>
    %59 = vector.shape_cast %58 : vector<1x8x128xf32> to vector<8x128xf32>
    %60 = arith.addf %54, %59 : vector<8x128xf32>
    %c20 = arith.constant 20 : index
    %c0_41 = arith.constant 0 : index
    %c0_42 = arith.constant 0 : index
    %61 = vector.load %arg2[%c20, %c0_41, %c0_42] : memref<48x8x128xf32, #tpu.memory_space<vmem>>, vector<1x8x128xf32>
    %62 = vector.shape_cast %61 : vector<1x8x128xf32> to vector<8x128xf32>
    %63 = arith.addf %57, %62 : vector<8x128xf32>
    %c21 = arith.constant 21 : index
    %c0_43 = arith.constant 0 : index
    %c0_44 = arith.constant 0 : index
    %64 = vector.load %arg2[%c21, %c0_43, %c0_44] : memref<48x8x128xf32, #tpu.memory_space<vmem>>, vector<1x8x128xf32>
    %65 = vector.shape_cast %64 : vector<1x8x128xf32> to vector<8x128xf32>
    %66 = arith.addf %60, %65 : vector<8x128xf32>
    %c22 = arith.constant 22 : index
    %c0_45 = arith.constant 0 : index
    %c0_46 = arith.constant 0 : index
    %67 = vector.load %arg2[%c22, %c0_45, %c0_46] : memref<48x8x128xf32, #tpu.memory_space<vmem>>, vector<1x8x128xf32>
    %68 = vector.shape_cast %67 : vector<1x8x128xf32> to vector<8x128xf32>
    %69 = arith.addf %63, %68 : vector<8x128xf32>
    %c23 = arith.constant 23 : index
    %c0_47 = arith.constant 0 : index
    %c0_48 = arith.constant 0 : index
    %70 = vector.load %arg2[%c23, %c0_47, %c0_48] : memref<48x8x128xf32, #tpu.memory_space<vmem>>, vector<1x8x128xf32>
    %71 = vector.shape_cast %70 : vector<1x8x128xf32> to vector<8x128xf32>
    %72 = arith.addf %66, %71 : vector<8x128xf32>
    %c24 = arith.constant 24 : index
    %c0_49 = arith.constant 0 : index
    %c0_50 = arith.constant 0 : index
    %73 = vector.load %arg2[%c24, %c0_49, %c0_50] : memref<48x8x128xf32, #tpu.memory_space<vmem>>, vector<1x8x128xf32>
    %74 = vector.shape_cast %73 : vector<1x8x128xf32> to vector<8x128xf32>
    %75 = arith.addf %69, %74 : vector<8x128xf32>
    %c25 = arith.constant 25 : index
    %c0_51 = arith.constant 0 : index
    %c0_52 = arith.constant 0 : index
    %76 = vector.load %arg2[%c25, %c0_51, %c0_52] : memref<48x8x128xf32, #tpu.memory_space<vmem>>, vector<1x8x128xf32>
    %77 = vector.shape_cast %76 : vector<1x8x128xf32> to vector<8x128xf32>
    %78 = arith.addf %72, %77 : vector<8x128xf32>
    %c26 = arith.constant 26 : index
    %c0_53 = arith.constant 0 : index
    %c0_54 = arith.constant 0 : index
    %79 = vector.load %arg2[%c26, %c0_53, %c0_54] : memref<48x8x128xf32, #tpu.memory_space<vmem>>, vector<1x8x128xf32>
    %80 = vector.shape_cast %79 : vector<1x8x128xf32> to vector<8x128xf32>
    %81 = arith.addf %75, %80 : vector<8x128xf32>
    %c27 = arith.constant 27 : index
    %c0_55 = arith.constant 0 : index
    %c0_56 = arith.constant 0 : index
    %82 = vector.load %arg2[%c27, %c0_55, %c0_56] : memref<48x8x128xf32, #tpu.memory_space<vmem>>, vector<1x8x128xf32>
    %83 = vector.shape_cast %82 : vector<1x8x128xf32> to vector<8x128xf32>
    %84 = arith.addf %78, %83 : vector<8x128xf32>
    %c28 = arith.constant 28 : index
    %c0_57 = arith.constant 0 : index
    %c0_58 = arith.constant 0 : index
    %85 = vector.load %arg2[%c28, %c0_57, %c0_58] : memref<48x8x128xf32, #tpu.memory_space<vmem>>, vector<1x8x128xf32>
    %86 = vector.shape_cast %85 : vector<1x8x128xf32> to vector<8x128xf32>
    %87 = arith.addf %81, %86 : vector<8x128xf32>
    %c29 = arith.constant 29 : index
    %c0_59 = arith.constant 0 : index
    %c0_60 = arith.constant 0 : index
    %88 = vector.load %arg2[%c29, %c0_59, %c0_60] : memref<48x8x128xf32, #tpu.memory_space<vmem>>, vector<1x8x128xf32>
    %89 = vector.shape_cast %88 : vector<1x8x128xf32> to vector<8x128xf32>
    %90 = arith.addf %84, %89 : vector<8x128xf32>
    %c30 = arith.constant 30 : index
    %c0_61 = arith.constant 0 : index
    %c0_62 = arith.constant 0 : index
    %91 = vector.load %arg2[%c30, %c0_61, %c0_62] : memref<48x8x128xf32, #tpu.memory_space<vmem>>, vector<1x8x128xf32>
    %92 = vector.shape_cast %91 : vector<1x8x128xf32> to vector<8x128xf32>
    %93 = arith.addf %87, %92 : vector<8x128xf32>
    %c31 = arith.constant 31 : index
    %c0_63 = arith.constant 0 : index
    %c0_64 = arith.constant 0 : index
    %94 = vector.load %arg2[%c31, %c0_63, %c0_64] : memref<48x8x128xf32, #tpu.memory_space<vmem>>, vector<1x8x128xf32>
    %95 = vector.shape_cast %94 : vector<1x8x128xf32> to vector<8x128xf32>
    %96 = arith.addf %90, %95 : vector<8x128xf32>
    %c32 = arith.constant 32 : index
    %c0_65 = arith.constant 0 : index
    %c0_66 = arith.constant 0 : index
    %97 = vector.load %arg2[%c32, %c0_65, %c0_66] : memref<48x8x128xf32, #tpu.memory_space<vmem>>, vector<1x8x128xf32>
    %98 = vector.shape_cast %97 : vector<1x8x128xf32> to vector<8x128xf32>
    %99 = arith.addf %93, %98 : vector<8x128xf32>
    %c33 = arith.constant 33 : index
    %c0_67 = arith.constant 0 : index
    %c0_68 = arith.constant 0 : index
    %100 = vector.load %arg2[%c33, %c0_67, %c0_68] : memref<48x8x128xf32, #tpu.memory_space<vmem>>, vector<1x8x128xf32>
    %101 = vector.shape_cast %100 : vector<1x8x128xf32> to vector<8x128xf32>
    %102 = arith.addf %96, %101 : vector<8x128xf32>
    %c34 = arith.constant 34 : index
    %c0_69 = arith.constant 0 : index
    %c0_70 = arith.constant 0 : index
    %103 = vector.load %arg2[%c34, %c0_69, %c0_70] : memref<48x8x128xf32, #tpu.memory_space<vmem>>, vector<1x8x128xf32>
    %104 = vector.shape_cast %103 : vector<1x8x128xf32> to vector<8x128xf32>
    %105 = arith.addf %99, %104 : vector<8x128xf32>
    %c35 = arith.constant 35 : index
    %c0_71 = arith.constant 0 : index
    %c0_72 = arith.constant 0 : index
    %106 = vector.load %arg2[%c35, %c0_71, %c0_72] : memref<48x8x128xf32, #tpu.memory_space<vmem>>, vector<1x8x128xf32>
    %107 = vector.shape_cast %106 : vector<1x8x128xf32> to vector<8x128xf32>
    %108 = arith.addf %102, %107 : vector<8x128xf32>
    %c36 = arith.constant 36 : index
    %c0_73 = arith.constant 0 : index
    %c0_74 = arith.constant 0 : index
    %109 = vector.load %arg2[%c36, %c0_73, %c0_74] : memref<48x8x128xf32, #tpu.memory_space<vmem>>, vector<1x8x128xf32>
    %110 = vector.shape_cast %109 : vector<1x8x128xf32> to vector<8x128xf32>
    %111 = arith.addf %105, %110 : vector<8x128xf32>
    %c37 = arith.constant 37 : index
    %c0_75 = arith.constant 0 : index
    %c0_76 = arith.constant 0 : index
    %112 = vector.load %arg2[%c37, %c0_75, %c0_76] : memref<48x8x128xf32, #tpu.memory_space<vmem>>, vector<1x8x128xf32>
    %113 = vector.shape_cast %112 : vector<1x8x128xf32> to vector<8x128xf32>
    %114 = arith.addf %108, %113 : vector<8x128xf32>
    %c38 = arith.constant 38 : index
    %c0_77 = arith.constant 0 : index
    %c0_78 = arith.constant 0 : index
    %115 = vector.load %arg2[%c38, %c0_77, %c0_78] : memref<48x8x128xf32, #tpu.memory_space<vmem>>, vector<1x8x128xf32>
    %116 = vector.shape_cast %115 : vector<1x8x128xf32> to vector<8x128xf32>
    %117 = arith.addf %111, %116 : vector<8x128xf32>
    %c39 = arith.constant 39 : index
    %c0_79 = arith.constant 0 : index
    %c0_80 = arith.constant 0 : index
    %118 = vector.load %arg2[%c39, %c0_79, %c0_80] : memref<48x8x128xf32, #tpu.memory_space<vmem>>, vector<1x8x128xf32>
    %119 = vector.shape_cast %118 : vector<1x8x128xf32> to vector<8x128xf32>
    %120 = arith.addf %114, %119 : vector<8x128xf32>
    %c40 = arith.constant 40 : index
    %c0_81 = arith.constant 0 : index
    %c0_82 = arith.constant 0 : index
    %121 = vector.load %arg2[%c40, %c0_81, %c0_82] : memref<48x8x128xf32, #tpu.memory_space<vmem>>, vector<1x8x128xf32>
    %122 = vector.shape_cast %121 : vector<1x8x128xf32> to vector<8x128xf32>
    %123 = arith.addf %117, %122 : vector<8x128xf32>
    %c41 = arith.constant 41 : index
    %c0_83 = arith.constant 0 : index
    %c0_84 = arith.constant 0 : index
    %124 = vector.load %arg2[%c41, %c0_83, %c0_84] : memref<48x8x128xf32, #tpu.memory_space<vmem>>, vector<1x8x128xf32>
    %125 = vector.shape_cast %124 : vector<1x8x128xf32> to vector<8x128xf32>
    %126 = arith.addf %120, %125 : vector<8x128xf32>
    %c42 = arith.constant 42 : index
    %c0_85 = arith.constant 0 : index
    %c0_86 = arith.constant 0 : index
    %127 = vector.load %arg2[%c42, %c0_85, %c0_86] : memref<48x8x128xf32, #tpu.memory_space<vmem>>, vector<1x8x128xf32>
    %128 = vector.shape_cast %127 : vector<1x8x128xf32> to vector<8x128xf32>
    %129 = arith.addf %123, %128 : vector<8x128xf32>
    %c43 = arith.constant 43 : index
    %c0_87 = arith.constant 0 : index
    %c0_88 = arith.constant 0 : index
    %130 = vector.load %arg2[%c43, %c0_87, %c0_88] : memref<48x8x128xf32, #tpu.memory_space<vmem>>, vector<1x8x128xf32>
    %131 = vector.shape_cast %130 : vector<1x8x128xf32> to vector<8x128xf32>
    %132 = arith.addf %126, %131 : vector<8x128xf32>
    %c44 = arith.constant 44 : index
    %c0_89 = arith.constant 0 : index
    %c0_90 = arith.constant 0 : index
    %133 = vector.load %arg2[%c44, %c0_89, %c0_90] : memref<48x8x128xf32, #tpu.memory_space<vmem>>, vector<1x8x128xf32>
    %134 = vector.shape_cast %133 : vector<1x8x128xf32> to vector<8x128xf32>
    %135 = arith.addf %129, %134 : vector<8x128xf32>
    %c45 = arith.constant 45 : index
    %c0_91 = arith.constant 0 : index
    %c0_92 = arith.constant 0 : index
    %136 = vector.load %arg2[%c45, %c0_91, %c0_92] : memref<48x8x128xf32, #tpu.memory_space<vmem>>, vector<1x8x128xf32>
    %137 = vector.shape_cast %136 : vector<1x8x128xf32> to vector<8x128xf32>
    %138 = arith.addf %132, %137 : vector<8x128xf32>
    %c46 = arith.constant 46 : index
    %c0_93 = arith.constant 0 : index
    %c0_94 = arith.constant 0 : index
    %139 = vector.load %arg2[%c46, %c0_93, %c0_94] : memref<48x8x128xf32, #tpu.memory_space<vmem>>, vector<1x8x128xf32>
    %140 = vector.shape_cast %139 : vector<1x8x128xf32> to vector<8x128xf32>
    %141 = arith.addf %135, %140 : vector<8x128xf32>
    %c47 = arith.constant 47 : index
    %c0_95 = arith.constant 0 : index
    %c0_96 = arith.constant 0 : index
    %142 = vector.load %arg2[%c47, %c0_95, %c0_96] : memref<48x8x128xf32, #tpu.memory_space<vmem>>, vector<1x8x128xf32>
    %143 = vector.shape_cast %142 : vector<1x8x128xf32> to vector<8x128xf32>
    %144 = arith.addf %138, %143 : vector<8x128xf32>
    %cst = arith.constant 0.0416666679 : f32
    %145 = vector.broadcast %cst : f32 to vector<8x128xf32>
    %146 = arith.mulf %141, %145 : vector<8x128xf32>
    %cst_97 = arith.constant 0.0416666679 : f32
    %147 = vector.broadcast %cst_97 : f32 to vector<8x128xf32>
    %148 = arith.mulf %144, %147 : vector<8x128xf32>
    %c2_98 = arith.constant 2 : index
    %c0_99 = arith.constant 0 : index
    %c0_100 = arith.constant 0 : index
    %149 = vector.load %arg2[%c2_98, %c0_99, %c0_100] : memref<48x8x128xf32, #tpu.memory_space<vmem>>, vector<1x8x128xf32>
    %150 = vector.shape_cast %149 : vector<1x8x128xf32> to vector<8x128xf32>
    %c3_101 = arith.constant 3 : index
    %c0_102 = arith.constant 0 : index
    %c0_103 = arith.constant 0 : index
    %151 = vector.load %arg2[%c3_101, %c0_102, %c0_103] : memref<48x8x128xf32, #tpu.memory_space<vmem>>, vector<1x8x128xf32>
    %152 = vector.shape_cast %151 : vector<1x8x128xf32> to vector<8x128xf32>
    %c8_104 = arith.constant 8 : index
    %c0_105 = arith.constant 0 : index
    %c0_106 = arith.constant 0 : index
    %153 = vector.load %arg2[%c8_104, %c0_105, %c0_106] : memref<48x8x128xf32, #tpu.memory_space<vmem>>, vector<1x8x128xf32>
    %154 = vector.shape_cast %153 : vector<1x8x128xf32> to vector<8x128xf32>
    %c9_107 = arith.constant 9 : index
    %c0_108 = arith.constant 0 : index
    %c0_109 = arith.constant 0 : index
    %155 = vector.load %arg2[%c9_107, %c0_108, %c0_109] : memref<48x8x128xf32, #tpu.memory_space<vmem>>, vector<1x8x128xf32>
    %156 = vector.shape_cast %155 : vector<1x8x128xf32> to vector<8x128xf32>
    %157 = arith.minimumf %150, %154 : vector<8x128xf32>
    %158 = arith.maximumf %150, %154 : vector<8x128xf32>
    %159 = arith.addf %150, %154 : vector<8x128xf32>
    %160 = arith.minimumf %152, %156 : vector<8x128xf32>
    %161 = arith.maximumf %152, %156 : vector<8x128xf32>
    %162 = arith.addf %152, %156 : vector<8x128xf32>
    %c14_110 = arith.constant 14 : index
    %c0_111 = arith.constant 0 : index
    %c0_112 = arith.constant 0 : index
    %163 = vector.load %arg2[%c14_110, %c0_111, %c0_112] : memref<48x8x128xf32, #tpu.memory_space<vmem>>, vector<1x8x128xf32>
    %164 = vector.shape_cast %163 : vector<1x8x128xf32> to vector<8x128xf32>
    %c15_113 = arith.constant 15 : index
    %c0_114 = arith.constant 0 : index
    %c0_115 = arith.constant 0 : index
    %165 = vector.load %arg2[%c15_113, %c0_114, %c0_115] : memref<48x8x128xf32, #tpu.memory_space<vmem>>, vector<1x8x128xf32>
    %166 = vector.shape_cast %165 : vector<1x8x128xf32> to vector<8x128xf32>
    %167 = arith.minimumf %157, %164 : vector<8x128xf32>
    %168 = arith.maximumf %158, %164 : vector<8x128xf32>
    %169 = arith.addf %159, %164 : vector<8x128xf32>
    %170 = arith.minimumf %160, %166 : vector<8x128xf32>
    %171 = arith.maximumf %161, %166 : vector<8x128xf32>
    %172 = arith.addf %162, %166 : vector<8x128xf32>
    %c20_116 = arith.constant 20 : index
    %c0_117 = arith.constant 0 : index
    %c0_118 = arith.constant 0 : index
    %173 = vector.load %arg2[%c20_116, %c0_117, %c0_118] : memref<48x8x128xf32, #tpu.memory_space<vmem>>, vector<1x8x128xf32>
    %174 = vector.shape_cast %173 : vector<1x8x128xf32> to vector<8x128xf32>
    %c21_119 = arith.constant 21 : index
    %c0_120 = arith.constant 0 : index
    %c0_121 = arith.constant 0 : index
    %175 = vector.load %arg2[%c21_119, %c0_120, %c0_121] : memref<48x8x128xf32, #tpu.memory_space<vmem>>, vector<1x8x128xf32>
    %176 = vector.shape_cast %175 : vector<1x8x128xf32> to vector<8x128xf32>
    %177 = arith.minimumf %167, %174 : vector<8x128xf32>
    %178 = arith.maximumf %168, %174 : vector<8x128xf32>
    %179 = arith.addf %169, %174 : vector<8x128xf32>
    %180 = arith.minimumf %170, %176 : vector<8x128xf32>
    %181 = arith.maximumf %171, %176 : vector<8x128xf32>
    %182 = arith.addf %172, %176 : vector<8x128xf32>
    %c4_122 = arith.constant 4 : index
    %c0_123 = arith.constant 0 : index
    %c0_124 = arith.constant 0 : index
    %183 = vector.load %arg2[%c4_122, %c0_123, %c0_124] : memref<48x8x128xf32, #tpu.memory_space<vmem>>, vector<1x8x128xf32>
    %184 = vector.shape_cast %183 : vector<1x8x128xf32> to vector<8x128xf32>
    %c5_125 = arith.constant 5 : index
    %c0_126 = arith.constant 0 : index
    %c0_127 = arith.constant 0 : index
    %185 = vector.load %arg2[%c5_125, %c0_126, %c0_127] : memref<48x8x128xf32, #tpu.memory_space<vmem>>, vector<1x8x128xf32>
    %186 = vector.shape_cast %185 : vector<1x8x128xf32> to vector<8x128xf32>
    %187 = arith.minimumf %177, %184 : vector<8x128xf32>
    %188 = arith.maximumf %178, %184 : vector<8x128xf32>
    %189 = arith.addf %179, %184 : vector<8x128xf32>
    %190 = arith.minimumf %180, %186 : vector<8x128xf32>
    %191 = arith.maximumf %181, %186 : vector<8x128xf32>
    %192 = arith.addf %182, %186 : vector<8x128xf32>
    %c10_128 = arith.constant 10 : index
    %c0_129 = arith.constant 0 : index
    %c0_130 = arith.constant 0 : index
    %193 = vector.load %arg2[%c10_128, %c0_129, %c0_130] : memref<48x8x128xf32, #tpu.memory_space<vmem>>, vector<1x8x128xf32>
    %194 = vector.shape_cast %193 : vector<1x8x128xf32> to vector<8x128xf32>
    %c11_131 = arith.constant 11 : index
    %c0_132 = arith.constant 0 : index
    %c0_133 = arith.constant 0 : index
    %195 = vector.load %arg2[%c11_131, %c0_132, %c0_133] : memref<48x8x128xf32, #tpu.memory_space<vmem>>, vector<1x8x128xf32>
    %196 = vector.shape_cast %195 : vector<1x8x128xf32> to vector<8x128xf32>
    %197 = arith.minimumf %187, %194 : vector<8x128xf32>
    %198 = arith.maximumf %188, %194 : vector<8x128xf32>
    %199 = arith.addf %189, %194 : vector<8x128xf32>
    %200 = arith.minimumf %190, %196 : vector<8x128xf32>
    %201 = arith.maximumf %191, %196 : vector<8x128xf32>
    %202 = arith.addf %192, %196 : vector<8x128xf32>
    %c16_134 = arith.constant 16 : index
    %c0_135 = arith.constant 0 : index
    %c0_136 = arith.constant 0 : index
    %203 = vector.load %arg2[%c16_134, %c0_135, %c0_136] : memref<48x8x128xf32, #tpu.memory_space<vmem>>, vector<1x8x128xf32>
    %204 = vector.shape_cast %203 : vector<1x8x128xf32> to vector<8x128xf32>
    %c17_137 = arith.constant 17 : index
    %c0_138 = arith.constant 0 : index
    %c0_139 = arith.constant 0 : index
    %205 = vector.load %arg2[%c17_137, %c0_138, %c0_139] : memref<48x8x128xf32, #tpu.memory_space<vmem>>, vector<1x8x128xf32>
    %206 = vector.shape_cast %205 : vector<1x8x128xf32> to vector<8x128xf32>
    %207 = arith.minimumf %197, %204 : vector<8x128xf32>
    %208 = arith.maximumf %198, %204 : vector<8x128xf32>
    %209 = arith.addf %199, %204 : vector<8x128xf32>
    %210 = arith.minimumf %200, %206 : vector<8x128xf32>
    %211 = arith.maximumf %201, %206 : vector<8x128xf32>
    %212 = arith.addf %202, %206 : vector<8x128xf32>
    %c22_140 = arith.constant 22 : index
    %c0_141 = arith.constant 0 : index
    %c0_142 = arith.constant 0 : index
    %213 = vector.load %arg2[%c22_140, %c0_141, %c0_142] : memref<48x8x128xf32, #tpu.memory_space<vmem>>, vector<1x8x128xf32>
    %214 = vector.shape_cast %213 : vector<1x8x128xf32> to vector<8x128xf32>
    %c23_143 = arith.constant 23 : index
    %c0_144 = arith.constant 0 : index
    %c0_145 = arith.constant 0 : index
    %215 = vector.load %arg2[%c23_143, %c0_144, %c0_145] : memref<48x8x128xf32, #tpu.memory_space<vmem>>, vector<1x8x128xf32>
    %216 = vector.shape_cast %215 : vector<1x8x128xf32> to vector<8x128xf32>
    %217 = arith.minimumf %207, %214 : vector<8x128xf32>
    %218 = arith.maximumf %208, %214 : vector<8x128xf32>
    %219 = arith.addf %209, %214 : vector<8x128xf32>
    %220 = arith.minimumf %210, %216 : vector<8x128xf32>
    %221 = arith.maximumf %211, %216 : vector<8x128xf32>
    %222 = arith.addf %212, %216 : vector<8x128xf32>
    %223 = arith.subf %218, %217 : vector<8x128xf32>
    %224 = arith.subf %221, %220 : vector<8x128xf32>
    %225 = arith.mulf %223, %224 : vector<8x128xf32>
    %cst_146 = arith.constant 1.250000e-01 : f32
    %226 = vector.broadcast %cst_146 : f32 to vector<8x128xf32>
    %227 = arith.mulf %219, %226 : vector<8x128xf32>
    %cst_147 = arith.constant 1.250000e-01 : f32
    %228 = vector.broadcast %cst_147 : f32 to vector<8x128xf32>
    %229 = arith.mulf %222, %228 : vector<8x128xf32>
    %230 = tpu.reciprocal %225 : vector<8x128xf32> -> vector<8x128xf32>
    %cst_148 = arith.constant -9.99999974E-5 : f32
    %231 = vector.broadcast %cst_148 : f32 to vector<8x128xf32>
    %232 = arith.mulf %225, %231 : vector<8x128xf32>
    %233 = math.exp %232 : vector<8x128xf32>
    %cst_149 = arith.constant 1.000000e+00 : f32
    %234 = vector.broadcast %cst_149 : f32 to vector<8x128xf32>
    %235 = arith.subf %234, %233 : vector<8x128xf32>
    %236 = arith.mulf %235, %230 : vector<8x128xf32>
    %237 = arith.subf %227, %146 : vector<8x128xf32>
    %238 = arith.mulf %237, %236 : vector<8x128xf32>
    %239 = arith.subf %146, %238 : vector<8x128xf32>
    %240 = arith.subf %229, %148 : vector<8x128xf32>
    %241 = arith.mulf %240, %236 : vector<8x128xf32>
    %242 = arith.subf %148, %241 : vector<8x128xf32>
    %c0_150 = arith.constant 0 : index
    %c0_151 = arith.constant 0 : index
    %c0_152 = arith.constant 0 : index
    %243 = vector.load %arg3[%c0_150, %c0_151, %c0_152] : memref<4x8x128xf32, #tpu.memory_space<vmem>>, vector<1x8x128xf32>
    %244 = vector.shape_cast %243 : vector<1x8x128xf32> to vector<8x128xf32>
    %c1_153 = arith.constant 1 : index
    %c0_154 = arith.constant 0 : index
    %c0_155 = arith.constant 0 : index
    %245 = vector.load %arg3[%c1_153, %c0_154, %c0_155] : memref<4x8x128xf32, #tpu.memory_space<vmem>>, vector<1x8x128xf32>
    %246 = vector.shape_cast %245 : vector<1x8x128xf32> to vector<8x128xf32>
    %c2_156 = arith.constant 2 : index
    %c0_157 = arith.constant 0 : index
    %c0_158 = arith.constant 0 : index
    %247 = vector.load %arg3[%c2_156, %c0_157, %c0_158] : memref<4x8x128xf32, #tpu.memory_space<vmem>>, vector<1x8x128xf32>
    %248 = vector.shape_cast %247 : vector<1x8x128xf32> to vector<8x128xf32>
    %c3_159 = arith.constant 3 : index
    %c0_160 = arith.constant 0 : index
    %c0_161 = arith.constant 0 : index
    %249 = vector.load %arg3[%c3_159, %c0_160, %c0_161] : memref<4x8x128xf32, #tpu.memory_space<vmem>>, vector<1x8x128xf32>
    %250 = vector.shape_cast %249 : vector<1x8x128xf32> to vector<8x128xf32>
    %251 = arith.mulf %244, %239 : vector<8x128xf32>
    %252 = arith.mulf %246, %242 : vector<8x128xf32>
    %253 = arith.addf %251, %252 : vector<8x128xf32>
    %254 = arith.mulf %244, %244 : vector<8x128xf32>
    %255 = arith.mulf %246, %246 : vector<8x128xf32>
    %256 = arith.addf %254, %255 : vector<8x128xf32>
    %257 = arith.mulf %248, %248 : vector<8x128xf32>
    %258 = arith.addf %256, %257 : vector<8x128xf32>
    %259 = math.rsqrt %258 : vector<8x128xf32>
    %260 = arith.addf %253, %250 : vector<8x128xf32>
    %261 = math.absf %260 : vector<8x128xf32>
    %262 = arith.mulf %261, %259 : vector<8x128xf32>
    %c1_i32 = arith.constant 1 : i32
    %263 = arith.muli %arg0, %c1_i32 : i32
    %264 = arith.addi %263, %arg1 : i32
    %265 = tpu.iota {dimensions = array<i32: 0>} : vector<8x128xi32>
    %266 = tpu.iota {dimensions = array<i32: 1>} : vector<8x128xi32>
    %c8_i32 = arith.constant 8 : i32
    %267 = arith.muli %264, %c8_i32 : i32
    %268 = vector.broadcast %267 : i32 to vector<8x128xi32>
    %269 = arith.addi %268, %265 : vector<8x128xi32>
    %c128_i32 = arith.constant 128 : i32
    %270 = vector.broadcast %c128_i32 : i32 to vector<8x128xi32>
    %271 = arith.muli %269, %270 : vector<8x128xi32>
    %272 = arith.addi %271, %266 : vector<8x128xi32>
    %c16_i32 = arith.constant 16 : i32
    %273 = vector.broadcast %c16_i32 : i32 to vector<8x128xi32>
    %274 = arith.cmpi slt, %272, %273 : vector<8x128xi32>
    %cst_162 = arith.constant 0.000000e+00 : f32
    %275 = vector.broadcast %cst_162 : f32 to vector<8x128xf32>
    %276 = arith.select %274, %262, %275 : vector<8x128xi1>, vector<8x128xf32>
    %c0_163 = arith.constant 0 : index
    %c0_164 = arith.constant 0 : index
    %277 = vector.load %arg4[%c0_163, %c0_164] : memref<8x128xf32, #tpu.memory_space<vmem>>, vector<8x128xf32>
    %278 = vector.shape_cast %276 : vector<8x128xf32> to vector<1x8x128xf32>
    %cst_165 = arith.constant dense<0.000000e+00> : vector<8x128xf32>
    %279 = vector.multi_reduction <add>, %278, %cst_165 [0] : vector<1x8x128xf32> to vector<8x128xf32>
    %280 = arith.addf %277, %279 : vector<8x128xf32>
    %c0_166 = arith.constant 0 : index
    %c0_167 = arith.constant 0 : index
    %281 = vector.load %arg4[%c0_166, %c0_167] : memref<8x128xf32, #tpu.memory_space<vmem>>, vector<8x128xf32>
    tpu.vector_store %arg4[%c0_166, %c0_167], %280 {strides = array<i32>} : memref<8x128xf32, #tpu.memory_space<vmem>>, vector<8x128xf32>,
    return
  }
  func.func @transform_0(%arg0: i32, %arg1: i32) -> (i32, i32, i32) {
    %c1_i32 = arith.constant 1 : i32
    %0 = arith.muli %arg0, %c1_i32 : i32
    %1 = arith.addi %0, %arg1 : i32
    %c0_i32 = arith.constant 0 : i32
    %c0_i32_0 = arith.constant 0 : i32
    %c0_i32_1 = arith.constant 0 : i32
    return %c0_i32, %1, %c0_i32_0 : i32, i32, i32
  }
  func.func @transform_1(%arg0: i32, %arg1: i32) -> (i32, i32, i32) {
    %c1_i32 = arith.constant 1 : i32
    %0 = arith.muli %arg0, %c1_i32 : i32
    %1 = arith.addi %0, %arg1 : i32
    %c0_i32 = arith.constant 0 : i32
    %c0_i32_0 = arith.constant 0 : i32
    %c0_i32_1 = arith.constant 0 : i32
    return %c0_i32, %1, %c0_i32_0 : i32, i32, i32
  }
  func.func @transform_2(%arg0: i32, %arg1: i32) -> (i32, i32) {
    %c0_i32 = arith.constant 0 : i32
    %c0_i32_0 = arith.constant 0 : i32
    return %arg0, %c0_i32 : i32, i32
  }
}

</mosaic_0001>

<llo_original>
// kernel: zmp_loss.2
$region0: #{zmp_loss.2}
  #allocation0 [shape = 'u32[]', space=smem, size = 0x4, offset = 0x4, fixed_abs, tag = 'smem constant byte address 0x4 - core index']
  #allocation1 [shape = 'u32[144,128]{1,0:T(1,128)}', space=vmem, size = 0x12000, scoped, tag = 'internal scratch']
  %s0 = inlined_call_operand.vmem [shape: f32[8,128,48], index: 0, kind: input, shape index: {}]
  %s1 = inlined_call_operand.vmem [shape: f32[1,4,8,128], index: 1, kind: input, shape index: {}]
  %s2 = inlined_call_operand.vmem [shape: f32[8,128], index: 2, kind: output, shape index: {}]
  %s3 = sld [smem:[#allocation0]]
  $region22: #{zmp_loss.2} parent=0
    _
  %s5 = ssub.s32 1, %s3
  %s6 = scalar_select 0, %s5, %s3
  $region1: #{zmp_loss.2} parent=0
    #allocation2 [shape = 'u8[196608]{0}', space=vmem, size = 0x30000, dematerialized = true, scoped, tag = 'FusionAdapter Buffer %fusion.1 = f32[48,8,128]{2,1,0:T(8,128)} fusion(%param_0.8), kind=kLoop, calls=%fused_computation.1.clone, metadata={op_name="jit(zmp_loss)/transpose" stack_frame_id=12}']
    #allocation3 [shape = 'u8[16384]{0}', space=vmem, size = 0x4000, dematerialized = true, scoped, tag = 'FusionAdapter Buffer %bitcast_bitcast_fusion.1 = f32[4,8,128]{2,1,0:T(8,128)} fusion(%param_1.3), kind=kLoop, calls=%fused_computation.3.clone.clone, metadata={op_name="jit(zmp_loss)/transpose" stack_frame_id=13}']
    // Predicated region
    $region2: #{zmp_loss.2} parent=1 // pred_check
      _
    $region3: #{zmp_loss.2} parent=1 // pred_check_branch
      %8 = sbr.rel (0) target = $region5
    $region4: #{zmp_loss.2} parent=1 // pred_region
      %s9 = sadd.s32 0, 0
      %p10 = scmp.lt.s32.totalorder %s9, 0
      %s11 = scalar_select %p10, %s9, 0
      %s12 = smul.addr %s11, 8
      %s13 = scalar_lea.vmem %s0, %s12
      %s14 = sadd.s32 0, 0
    $region5: #{zmp_loss.2} parent=1 // pred_fallthru
      _
    // Predicated region
    $region6: #{zmp_loss.2} parent=1 // pred_check
      _
    $region7: #{zmp_loss.2} parent=1 // pred_check_branch
      %16 = sbr.rel (0) target = $region9
    $region8: #{zmp_loss.2} parent=1 // pred_region
      %s17 = sadd.s32 0, 0
      %p18 = scmp.lt.s32.totalorder %s17, 0
      %s19 = scalar_select %p18, %s17, 0
      %s20 = smul.addr %s19, 8
      %s21 = scalar_lea.vmem %s1, %s20
      %s22 = sadd.s32 0, 0
    $region9: #{zmp_loss.2} parent=1 // pred_fallthru
      _
    %s23 = sadd.s32 0, 0
    %p24 = scmp.lt.s32.totalorder %s23, 0
    %s25 = scalar_select %p24, %s23, 0
    %s26 = smul.addr %s25, 8
    %s27 = scalar_lea.vmem %s0, %s26
    %s28 = sadd.s32 0, 0
    %p29 = scmp.lt.s32.totalorder %s28, 0
    %s30 = scalar_select %p29, %s28, 0
    %s31 = smul.addr %s30, 8
    %s32 = scalar_lea.vmem %s1, %s31
    %s33 = sadd.s32 0, 0
    %p34 = scmp.lt.s32.totalorder %s33, 0
    %s35 = scalar_select %p34, %s33, 0
    %s36 = smul.addr %s35, 8
    %s37 = scalar_lea.vmem %s0, %s36
    %s38 = sadd.s32 0, 0
    %s39 = sadd.s32 0, 0
    %p40 = scmp.lt.s32.totalorder %s39, 0
    %s41 = scalar_select %p40, %s39, 0
    %s42 = smul.addr %s41, 8
    %s43 = scalar_lea.vmem %s1, %s42
    %s44 = sadd.s32 0, 0
    %v45 = vld [vmem:[%s37] sm:$0xff]
    %47 = vst [vmem:[#allocation2] sm:$0xff] %v45
    %s48 = scalar_lea.vmem %s37, 8
    %v49 = vld [vmem:[%s48] sm:$0xff]
    %s50 = scalar_lea.vmem [#allocation2], 8
    %52 = vst [vmem:[%s50] sm:$0xff] %v49
    %s53 = scalar_lea.vmem %s37, 16
    %v54 = vld [vmem:[%s53] sm:$0xff]
    %s55 = scalar_lea.vmem [#allocation2], 16
    %57 = vst [vmem:[%s55] sm:$0xff] %v54
    %s58 = scalar_lea.vmem %s37, 24
    %v59 = vld [vmem:[%s58] sm:$0xff]
    %s60 = scalar_lea.vmem [#allocation2], 24
    %62 = vst [vmem:[%s60] sm:$0xff] %v59
    %s63 = scalar_lea.vmem %s37, 32
    %v64 = vld [vmem:[%s63] sm:$0xff]
    %s65 = scalar_lea.vmem [#allocation2], 32
    %67 = vst [vmem:[%s65] sm:$0xff] %v64
    %s68 = scalar_lea.vmem %s37, 40
    %v69 = vld [vmem:[%s68] sm:$0xff]
    %s70 = scalar_lea.vmem [#allocation2], 40
    %72 = vst [vmem:[%s70] sm:$0xff] %v69
    %s73 = scalar_lea.vmem %s37, 48
    %v74 = vld [vmem:[%s73] sm:$0xff]
    %s75 = scalar_lea.vmem [#allocation2], 48
    %77 = vst [vmem:[%s75] sm:$0xff] %v74
    %s78 = scalar_lea.vmem %s37, 56
    %v79 = vld [vmem:[%s78] sm:$0xff]
    %s80 = scalar_lea.vmem [#allocation2], 56
    %82 = vst [vmem:[%s80] sm:$0xff] %v79
    %s83 = scalar_lea.vmem %s37, 64
    %v84 = vld [vmem:[%s83] sm:$0xff]
    %s85 = scalar_lea.vmem [#allocation2], 64
    %87 = vst [vmem:[%s85] sm:$0xff] %v84
    %s88 = scalar_lea.vmem %s37, 72
    %v89 = vld [vmem:[%s88] sm:$0xff]
    %s90 = scalar_lea.vmem [#allocation2], 72
    %92 = vst [vmem:[%s90] sm:$0xff] %v89
    %s93 = scalar_lea.vmem %s37, 80
    %v94 = vld [vmem:[%s93] sm:$0xff]
    %s95 = scalar_lea.vmem [#allocation2], 80
    %97 = vst [vmem:[%s95] sm:$0xff] %v94
    %s98 = scalar_lea.vmem %s37, 88
    %v99 = vld [vmem:[%s98] sm:$0xff]
    %s100 = scalar_lea.vmem [#allocation2], 88
    %102 = vst [vmem:[%s100] sm:$0xff] %v99
    %s103 = scalar_lea.vmem %s37, 96
    %v104 = vld [vmem:[%s103] sm:$0xff]
    %s105 = scalar_lea.vmem [#allocation2], 96
    %107 = vst [vmem:[%s105] sm:$0xff] %v104
    %s108 = scalar_lea.vmem %s37, 104
    %v109 = vld [vmem:[%s108] sm:$0xff]
    %s110 = scalar_lea.vmem [#allocation2], 104
    %112 = vst [vmem:[%s110] sm:$0xff] %v109
    %s113 = scalar_lea.vmem %s37, 112
    %v114 = vld [vmem:[%s113] sm:$0xff]
    %s115 = scalar_lea.vmem [#allocation2], 112
    %117 = vst [vmem:[%s115] sm:$0xff] %v114
    %s118 = scalar_lea.vmem %s37, 120
    %v119 = vld [vmem:[%s118] sm:$0xff]
    %s120 = scalar_lea.vmem [#allocation2], 120
    %122 = vst [vmem:[%s120] sm:$0xff] %v119
    %s123 = scalar_lea.vmem %s37, 128
    %v124 = vld [vmem:[%s123] sm:$0xff]
    %s125 = scalar_lea.vmem [#allocation2], 128
    %127 = vst [vmem:[%s125] sm:$0xff] %v124
    %s128 = scalar_lea.vmem %s37, 136
    %v129 = vld [vmem:[%s128] sm:$0xff]
    %s130 = scalar_lea.vmem [#allocation2], 136
    %132 = vst [vmem:[%s130] sm:$0xff] %v129
    %s133 = scalar_lea.vmem %s37, 144
    %v134 = vld [vmem:[%s133] sm:$0xff]
    %s135 = scalar_lea.vmem [#allocation2], 144
    %137 = vst [vmem:[%s135] sm:$0xff] %v134
    %s138 = scalar_lea.vmem %s37, 152
    %v139 = vld [vmem:[%s138] sm:$0xff]
    %s140 = scalar_lea.vmem [#allocation2], 152
    %142 = vst [vmem:[%s140] sm:$0xff] %v139
    %s143 = scalar_lea.vmem %s37, 160
    %v144 = vld [vmem:[%s143] sm:$0xff]
    %s145 = scalar_lea.vmem [#allocation2], 160
    %147 = vst [vmem:[%s145] sm:$0xff] %v144
    %s148 = scalar_lea.vmem %s37, 168
    %v149 = vld [vmem:[%s148] sm:$0xff]
    %s150 = scalar_lea.vmem [#allocation2], 168
    %152 = vst [vmem:[%s150] sm:$0xff] %v149
    %s153 = scalar_lea.vmem %s37, 176
    %v154 = vld [vmem:[%s153] sm:$0xff]
    %s155 = scalar_lea.vmem [#allocation2], 176
    %157 = vst [vmem:[%s155] sm:$0xff] %v154
    %s158 = scalar_lea.vmem %s37, 184
    %v159 = vld [vmem:[%s158] sm:$0xff]
    %s160 = scalar_lea.vmem [#allocation2], 184
    %162 = vst [vmem:[%s160] sm:$0xff] %v159
    %s163 = scalar_lea.vmem %s37, 192
    %v164 = vld [vmem:[%s163] sm:$0xff]
    %s165 = scalar_lea.vmem [#allocation2], 192
    %167 = vst [vmem:[%s165] sm:$0xff] %v164
    %s168 = scalar_lea.vmem %s37, 200
    %v169 = vld [vmem:[%s168] sm:$0xff]
    %s170 = scalar_lea.vmem [#allocation2], 200
    %172 = vst [vmem:[%s170] sm:$0xff] %v169
    %s173 = scalar_lea.vmem %s37, 208
    %v174 = vld [vmem:[%s173] sm:$0xff]
    %s175 = scalar_lea.vmem [#allocation2], 208
    %177 = vst [vmem:[%s175] sm:$0xff] %v174
    %s178 = scalar_lea.vmem %s37, 216
    %v179 = vld [vmem:[%s178] sm:$0xff]
    %s180 = scalar_lea.vmem [#allocation2], 216
    %182 = vst [vmem:[%s180] sm:$0xff] %v179
    %s183 = scalar_lea.vmem %s37, 224
    %v184 = vld [vmem:[%s183] sm:$0xff]
    %s185 = scalar_lea.vmem [#allocation2], 224
    %187 = vst [vmem:[%s185] sm:$0xff] %v184
    %s188 = scalar_lea.vmem %s37, 232
    %v189 = vld [vmem:[%s188] sm:$0xff]
    %s190 = scalar_lea.vmem [#allocation2], 232
    %192 = vst [vmem:[%s190] sm:$0xff] %v189
    %s193 = scalar_lea.vmem %s37, 240
    %v194 = vld [vmem:[%s193] sm:$0xff]
    %s195 = scalar_lea.vmem [#allocation2], 240
    %197 = vst [vmem:[%s195] sm:$0xff] %v194
    %s198 = scalar_lea.vmem %s37, 248
    %v199 = vld [vmem:[%s198] sm:$0xff]
    %s200 = scalar_lea.vmem [#allocation2], 248
    %202 = vst [vmem:[%s200] sm:$0xff] %v199
    %s203 = scalar_lea.vmem %s37, 256
    %v204 = vld [vmem:[%s203] sm:$0xff]
    %s205 = scalar_lea.vmem [#allocation2], 256
    %207 = vst [vmem:[%s205] sm:$0xff] %v204
    %s208 = scalar_lea.vmem %s37, 264
    %v209 = vld [vmem:[%s208] sm:$0xff]
    %s210 = scalar_lea.vmem [#allocation2], 264
    %212 = vst [vmem:[%s210] sm:$0xff] %v209
    %s213 = scalar_lea.vmem %s37, 272
    %v214 = vld [vmem:[%s213] sm:$0xff]
    %s215 = scalar_lea.vmem [#allocation2], 272
    %217 = vst [vmem:[%s215] sm:$0xff] %v214
    %s218 = scalar_lea.vmem %s37, 280
    %v219 = vld [vmem:[%s218] sm:$0xff]
    %s220 = scalar_lea.vmem [#allocation2], 280
    %222 = vst [vmem:[%s220] sm:$0xff] %v219
    %s223 = scalar_lea.vmem %s37, 288
    %v224 = vld [vmem:[%s223] sm:$0xff]
    %s225 = scalar_lea.vmem [#allocation2], 288
    %227 = vst [vmem:[%s225] sm:$0xff] %v224
    %s228 = scalar_lea.vmem %s37, 296
    %v229 = vld [vmem:[%s228] sm:$0xff]
    %s230 = scalar_lea.vmem [#allocation2], 296
    %232 = vst [vmem:[%s230] sm:$0xff] %v229
    %s233 = scalar_lea.vmem %s37, 304
    %v234 = vld [vmem:[%s233] sm:$0xff]
    %s235 = scalar_lea.vmem [#allocation2], 304
    %237 = vst [vmem:[%s235] sm:$0xff] %v234
    %s238 = scalar_lea.vmem %s37, 312
    %v239 = vld [vmem:[%s238] sm:$0xff]
    %s240 = scalar_lea.vmem [#allocation2], 312
    %242 = vst [vmem:[%s240] sm:$0xff] %v239
    %s243 = scalar_lea.vmem %s37, 320
    %v244 = vld [vmem:[%s243] sm:$0xff]
    %s245 = scalar_lea.vmem [#allocation2], 320
    %247 = vst [vmem:[%s245] sm:$0xff] %v244
    %s248 = scalar_lea.vmem %s37, 328
    %v249 = vld [vmem:[%s248] sm:$0xff]
    %s250 = scalar_lea.vmem [#allocation2], 328
    %252 = vst [vmem:[%s250] sm:$0xff] %v249
    %s253 = scalar_lea.vmem %s37, 336
    %v254 = vld [vmem:[%s253] sm:$0xff]
    %s255 = scalar_lea.vmem [#allocation2], 336
    %257 = vst [vmem:[%s255] sm:$0xff] %v254
    %s258 = scalar_lea.vmem %s37, 344
    %v259 = vld [vmem:[%s258] sm:$0xff]
    %s260 = scalar_lea.vmem [#allocation2], 344
    %262 = vst [vmem:[%s260] sm:$0xff] %v259
    %s263 = scalar_lea.vmem %s37, 352
    %v264 = vld [vmem:[%s263] sm:$0xff]
    %s265 = scalar_lea.vmem [#allocation2], 352
    %267 = vst [vmem:[%s265] sm:$0xff] %v264
    %s268 = scalar_lea.vmem %s37, 360
    %v269 = vld [vmem:[%s268] sm:$0xff]
    %s270 = scalar_lea.vmem [#allocation2], 360
    %272 = vst [vmem:[%s270] sm:$0xff] %v269
    %s273 = scalar_lea.vmem %s37, 368
    %v274 = vld [vmem:[%s273] sm:$0xff]
    %s275 = scalar_lea.vmem [#allocation2], 368
    %277 = vst [vmem:[%s275] sm:$0xff] %v274
    %s278 = scalar_lea.vmem %s37, 376
    %v279 = vld [vmem:[%s278] sm:$0xff]
    %s280 = scalar_lea.vmem [#allocation2], 376
    %282 = vst [vmem:[%s280] sm:$0xff] %v279
    %v283 = vld [vmem:[%s43] sm:$0xff]
    %285 = vst [vmem:[#allocation3] sm:$0xff] %v283
    %s286 = scalar_lea.vmem %s43, 8
    %v287 = vld [vmem:[%s286] sm:$0xff]
    %s288 = scalar_lea.vmem [#allocation3], 8
    %290 = vst [vmem:[%s288] sm:$0xff] %v287
    %s291 = scalar_lea.vmem %s43, 16
    %v292 = vld [vmem:[%s291] sm:$0xff]
    %s293 = scalar_lea.vmem [#allocation3], 16
    %295 = vst [vmem:[%s293] sm:$0xff] %v292
    %s296 = scalar_lea.vmem %s43, 24
    %v297 = vld [vmem:[%s296] sm:$0xff]
    %s298 = scalar_lea.vmem [#allocation3], 24
    %300 = vst [vmem:[%s298] sm:$0xff] %v297
    %p301 = scmp.eq.s32.totalorder 0, 0
    // Predicated region
    $region10: #{zmp_loss.2} parent=1 // pred_check
      %p302 = pneg %p301
    $region11: #{zmp_loss.2} parent=1 // pred_check_branch
      %304 = sbr.rel (%p302) target = $region13
    $region12: #{zmp_loss.2} parent=1 // pred_region
      %305 = vst [vmem:[%s2] sm:$0xff] 0.0
    $region13: #{zmp_loss.2} parent=1 // pred_fallthru
      _
    %v306 = vld [vmem:[#allocation2] sm:$0xff]
    %s307 = scalar_lea.vmem [#allocation2], 8
    %v308 = vld [vmem:[%s307] sm:$0xff]
    %s309 = scalar_lea.vmem [#allocation2], 16
    %v310 = vld [vmem:[%s309] sm:$0xff]
    %v311 = vadd.f32 %v306, %v310
    %s312 = scalar_lea.vmem [#allocation2], 24
    %v313 = vld [vmem:[%s312] sm:$0xff]
    %v314 = vadd.f32 %v308, %v313
    %s315 = scalar_lea.vmem [#allocation2], 32
    %v316 = vld [vmem:[%s315] sm:$0xff]
    %v317 = vadd.f32 %v311, %v316
    %s318 = scalar_lea.vmem [#allocation2], 40
    %v319 = vld [vmem:[%s318] sm:$0xff]
    %v320 = vadd.f32 %v314, %v319
    %s321 = scalar_lea.vmem [#allocation2], 48
    %v322 = vld [vmem:[%s321] sm:$0xff]
    %v323 = vadd.f32 %v317, %v322
    %s324 = scalar_lea.vmem [#allocation2], 56
    %v325 = vld [vmem:[%s324] sm:$0xff]
    %v326 = vadd.f32 %v320, %v325
    %s327 = scalar_lea.vmem [#allocation2], 64
    %v328 = vld [vmem:[%s327] sm:$0xff]
    %v329 = vadd.f32 %v323, %v328
    %s330 = scalar_lea.vmem [#allocation2], 72
    %v331 = vld [vmem:[%s330] sm:$0xff]
    %v332 = vadd.f32 %v326, %v331
    %s333 = scalar_lea.vmem [#allocation2], 80
    %v334 = vld [vmem:[%s333] sm:$0xff]
    %v335 = vadd.f32 %v329, %v334
    %s336 = scalar_lea.vmem [#allocation2], 88
    %v337 = vld [vmem:[%s336] sm:$0xff]
    %v338 = vadd.f32 %v332, %v337
    %s339 = scalar_lea.vmem [#allocation2], 96
    %v340 = vld [vmem:[%s339] sm:$0xff]
    %v341 = vadd.f32 %v335, %v340
    %s342 = scalar_lea.vmem [#allocation2], 104
    %v343 = vld [vmem:[%s342] sm:$0xff]
    %v344 = vadd.f32 %v338, %v343
    %s345 = scalar_lea.vmem [#allocation2], 112
    %v346 = vld [vmem:[%s345] sm:$0xff]
    %v347 = vadd.f32 %v341, %v346
    %s348 = scalar_lea.vmem [#allocation2], 120
    %v349 = vld [vmem:[%s348] sm:$0xff]
    %v350 = vadd.f32 %v344, %v349
    %s351 = scalar_lea.vmem [#allocation2], 128
    %v352 = vld [vmem:[%s351] sm:$0xff]
    %v353 = vadd.f32 %v347, %v352
    %s354 = scalar_lea.vmem [#allocation2], 136
    %v355 = vld [vmem:[%s354] sm:$0xff]
    %v356 = vadd.f32 %v350, %v355
    %s357 = scalar_lea.vmem [#allocation2], 144
    %v358 = vld [vmem:[%s357] sm:$0xff]
    %v359 = vadd.f32 %v353, %v358
    %s360 = scalar_lea.vmem [#allocation2], 152
    %v361 = vld [vmem:[%s360] sm:$0xff]
    %v362 = vadd.f32 %v356, %v361
    %s363 = scalar_lea.vmem [#allocation2], 160
    %v364 = vld [vmem:[%s363] sm:$0xff]
    %v365 = vadd.f32 %v359, %v364
    %s366 = scalar_lea.vmem [#allocation2], 168
    %v367 = vld [vmem:[%s366] sm:$0xff]
    %v368 = vadd.f32 %v362, %v367
    %s369 = scalar_lea.vmem [#allocation2], 176
    %v370 = vld [vmem:[%s369] sm:$0xff]
    %v371 = vadd.f32 %v365, %v370
    %s372 = scalar_lea.vmem [#allocation2], 184
    %v373 = vld [vmem:[%s372] sm:$0xff]
    %v374 = vadd.f32 %v368, %v373
    %s375 = scalar_lea.vmem [#allocation2], 192
    %v376 = vld [vmem:[%s375] sm:$0xff]
    %v377 = vadd.f32 %v371, %v376
    %s378 = scalar_lea.vmem [#allocation2], 200
    %v379 = vld [vmem:[%s378] sm:$0xff]
    %v380 = vadd.f32 %v374, %v379
    %s381 = scalar_lea.vmem [#allocation2], 208
    %v382 = vld [vmem:[%s381] sm:$0xff]
    %v383 = vadd.f32 %v377, %v382
    %s384 = scalar_lea.vmem [#allocation2], 216
    %v385 = vld [vmem:[%s384] sm:$0xff]
    %v386 = vadd.f32 %v380, %v385
    %s387 = scalar_lea.vmem [#allocation2], 224
    %v388 = vld [vmem:[%s387] sm:$0xff]
    %v389 = vadd.f32 %v383, %v388
    %s390 = scalar_lea.vmem [#allocation2], 232
    %v391 = vld [vmem:[%s390] sm:$0xff]
    %v392 = vadd.f32 %v386, %v391
    %s393 = scalar_lea.vmem [#allocation2], 240
    %v394 = vld [vmem:[%s393] sm:$0xff]
    %v395 = vadd.f32 %v389, %v394
    %s396 = scalar_lea.vmem [#allocation2], 248
    %v397 = vld [vmem:[%s396] sm:$0xff]
    %v398 = vadd.f32 %v392, %v397
    %s399 = scalar_lea.vmem [#allocation2], 256
    %v400 = vld [vmem:[%s399] sm:$0xff]
    %v401 = vadd.f32 %v395, %v400
    %s402 = scalar_lea.vmem [#allocation2], 264
    %v403 = vld [vmem:[%s402] sm:$0xff]
    %v404 = vadd.f32 %v398, %v403
    %s405 = scalar_lea.vmem [#allocation2], 272
    %v406 = vld [vmem:[%s405] sm:$0xff]
    %v407 = vadd.f32 %v401, %v406
    %s408 = scalar_lea.vmem [#allocation2], 280
    %v409 = vld [vmem:[%s408] sm:$0xff]
    %v410 = vadd.f32 %v404, %v409
    %s411 = scalar_lea.vmem [#allocation2], 288
    %v412 = vld [vmem:[%s411] sm:$0xff]
    %v413 = vadd.f32 %v407, %v412
    %s414 = scalar_lea.vmem [#allocation2], 296
    %v415 = vld [vmem:[%s414] sm:$0xff]
    %v416 = vadd.f32 %v410, %v415
    %s417 = scalar_lea.vmem [#allocation2], 304
    %v418 = vld [vmem:[%s417] sm:$0xff]
    %v419 = vadd.f32 %v413, %v418
    %s420 = scalar_lea.vmem [#allocation2], 312
    %v421 = vld [vmem:[%s420] sm:$0xff]
    %v422 = vadd.f32 %v416, %v421
    %s423 = scalar_lea.vmem [#allocation2], 320
    %v424 = vld [vmem:[%s423] sm:$0xff]
    %v425 = vadd.f32 %v419, %v424
    %s426 = scalar_lea.vmem [#allocation2], 328
    %v427 = vld [vmem:[%s426] sm:$0xff]
    %v428 = vadd.f32 %v422, %v427
    %s429 = scalar_lea.vmem [#allocation2], 336
    %v430 = vld [vmem:[%s429] sm:$0xff]
    %v431 = vadd.f32 %v425, %v430
    %s432 = scalar_lea.vmem [#allocation2], 344
    %v433 = vld [vmem:[%s432] sm:$0xff]
    %v434 = vadd.f32 %v428, %v433
    %s435 = scalar_lea.vmem [#allocation2], 352
    %v436 = vld [vmem:[%s435] sm:$0xff]
    %v437 = vadd.f32 %v431, %v436
    %s438 = scalar_lea.vmem [#allocation2], 360
    %v439 = vld [vmem:[%s438] sm:$0xff]
    %v440 = vadd.f32 %v434, %v439
    %s441 = scalar_lea.vmem [#allocation2], 368
    %v442 = vld [vmem:[%s441] sm:$0xff]
    %v443 = vadd.f32 %v437, %v442
    %s444 = scalar_lea.vmem [#allocation2], 376
    %v445 = vld [vmem:[%s444] sm:$0xff]
    %v446 = vadd.f32 %v440, %v445
    %v447 = vmul.f32 %v443, 0.041666668
    %v448 = vmul.f32 %v446, 0.041666668
    %v449 = vmin.f32 %v310, %v328
    %v450 = vmax.f32 %v310, %v328
    %v451 = vadd.f32 %v310, %v328
    %v452 = vmin.f32 %v313, %v331
    %v453 = vmax.f32 %v313, %v331
    %v454 = vadd.f32 %v313, %v331
    %v455 = vmin.f32 %v449, %v346
    %v456 = vmax.f32 %v450, %v346
    %v457 = vadd.f32 %v451, %v346
    %v458 = vmin.f32 %v452, %v349
    %v459 = vmax.f32 %v453, %v349
    %v460 = vadd.f32 %v454, %v349
    %v461 = vmin.f32 %v455, %v364
    %v462 = vmax.f32 %v456, %v364
    %v463 = vadd.f32 %v457, %v364
    %v464 = vmin.f32 %v458, %v367
    %v465 = vmax.f32 %v459, %v367
    %v466 = vadd.f32 %v460, %v367
    %v467 = vmin.f32 %v461, %v316
    %v468 = vmax.f32 %v462, %v316
    %v469 = vadd.f32 %v463, %v316
    %v470 = vmin.f32 %v464, %v319
    %v471 = vmax.f32 %v465, %v319
    %v472 = vadd.f32 %v466, %v319
    %v473 = vmin.f32 %v467, %v334
    %v474 = vmax.f32 %v468, %v334
    %v475 = vadd.f32 %v469, %v334
    %v476 = vmin.f32 %v470, %v337
    %v477 = vmax.f32 %v471, %v337
    %v478 = vadd.f32 %v472, %v337
    %v479 = vmin.f32 %v473, %v352
    %v480 = vmax.f32 %v474, %v352
    %v481 = vadd.f32 %v475, %v352
    %v482 = vmin.f32 %v476, %v355
    %v483 = vmax.f32 %v477, %v355
    %v484 = vadd.f32 %v478, %v355
    %v485 = vmin.f32 %v479, %v370
    %v486 = vmax.f32 %v480, %v370
    %v487 = vadd.f32 %v481, %v370
    %v488 = vmin.f32 %v482, %v373
    %v489 = vmax.f32 %v483, %v373
    %v490 = vadd.f32 %v484, %v373
    %v491 = vsub.f32 %v486, %v485
    %v492 = vsub.f32 %v489, %v488
    %v493 = vmul.f32 %v491, %v492
    %v494 = vmul.f32 %v487, 0.125
    %v495 = vmul.f32 %v490, 0.125
    %v496 = vrcp.pop %v493
    %v497 = vmul.f32 %v493, -0.0001
    %v498 = vmul.f32 %v497, 1.442695
    %v499 = vpow.pop %v498
    %v500 = vsub.f32 1.0, %v499
    %v501 = vmul.f32 %v500, %v496
    %v502 = vsub.f32 %v494, %v447
    %v503 = vmul.f32 %v502, %v501
    %v504 = vsub.f32 %v447, %v503
    %v505 = vsub.f32 %v495, %v448
    %v506 = vmul.f32 %v505, %v501
    %v507 = vsub.f32 %v448, %v506
    %v508 = vld [vmem:[#allocation3] sm:$0xff]
    %s509 = scalar_lea.vmem [#allocation3], 8
    %v510 = vld [vmem:[%s509] sm:$0xff]
    %s511 = scalar_lea.vmem [#allocation3], 16
    %v512 = vld [vmem:[%s511] sm:$0xff]
    %s513 = scalar_lea.vmem [#allocation3], 24
    %v514 = vld [vmem:[%s513] sm:$0xff]
    %v515 = vmul.f32 %v508, %v504
    %v516 = vmul.f32 %v510, %v507
    %v517 = vadd.f32 %v515, %v516
    %v518 = vmul.f32 %v508, %v508
    %v519 = vmul.f32 %v510, %v510
    %v520 = vadd.f32 %v518, %v519
    %v521 = vmul.f32 %v512, %v512
    %v522 = vadd.f32 %v520, %v521
    %v523 = vrsqrt.pop %v522
    %v524 = vadd.f32 %v517, %v514
    %v525 = vand.u32 2147483647, %v524
    %v526 = vmul.f32 %v525, %v523
    %s527 = sadd.s32 0, 0
    %v528 = vlaneseq
    %v529 = vshrl.u32 %v528, 7
    %v530 = vlaneseq
    %v531 = vand.u32 %v530, 127
    %s532 = smul.u32 %s527, 8
    %v533 = vstv %s532
    %v534 = vadd.s32 %v533, %v529
    %v535 = vmul.u32 %v534, 128
    %v536 = vadd.s32 %v535, %v531
    %vm537 = vcmp.lt.s32.totalorder %v536, 16
    %v538 = vsel %vm537, %v526, 0.0
    %v539 = vld [vmem:[%s2] sm:$0xff]
    %v540 = vadd.f32 %v538, 0.0
    %v541 = vadd.f32 %v539, %v540
    %542 = vst [vmem:[%s2] sm:$0xff] %v541
    // Predicated region
    $region14: #{zmp_loss.2} parent=1 // pred_check
      _
    $region15: #{zmp_loss.2} parent=1 // pred_check_branch
      %544 = sbr.rel (0) target = $region17
    $region16: #{zmp_loss.2} parent=1 // pred_region
      _
    $region17: #{zmp_loss.2} parent=1 // pred_fallthru
      _
    // Predicated region
    $region18: #{zmp_loss.2} parent=1 // pred_check
      _
    $region19: #{zmp_loss.2} parent=1 // pred_check_branch
      %546 = sbr.rel (0) target = $region21
    $region20: #{zmp_loss.2} parent=1 // pred_region
      _
    $region21: #{zmp_loss.2} parent=1 // pred_fallthru
      _

</llo_original>
